<compile_context>
chip_gen: v7x
topology: tpu7x:2x2x1
jax: 0.10.0
libtpu: 0.0.40
codegen_flags: <defaults>
</compile_context>

<pallas_src>
from functools import partial

import jax
import jax.numpy as jnp
from jax.experimental import pallas as pl
from jax.experimental.pallas import tpu as pltpu


def _round_up(v, m):
    return (v + m - 1) // m * m


def _pick_divisor_tile(total, requested):
    """Largest multiple of 128 that divides `total` (itself a multiple of 128)
    and is <= requested.  128 always qualifies."""
    requested = max(128, min(requested, total))
    best = 128
    t = 128
    while t <= requested:
        if total % t == 0:
            best = t
        t += 128
    return best


# ---------------------------------------------------------------------------
# One-time parameter preparation (hoisted out of the per-call hot path):
# transpose weights to matmul-friendly layout, zero-pad lane dims to multiples
# of 128, cast to the MXU compute dtype.  Biases stay f32.
# ---------------------------------------------------------------------------
def prepare_params(params, *, compute_dtype=jnp.bfloat16):
    w_enc = jnp.asarray(params["w_enc"])          # (H, D) — torch nn.Linear
    b_enc = jnp.asarray(params["b_enc"])          # (H,)
    w_dec = jnp.asarray(params["w_dec"])          # (D, H)
    b_dec = jnp.asarray(params["b_dec"])          # (D,)

    hidden_dim, input_dim = w_enc.shape
    Dp = _round_up(input_dim, 128)
    Hp = _round_up(hidden_dim, 128)

    def pad2d(a, rows, cols, dtype):
        a = a.astype(dtype)
        return jnp.pad(a, ((0, rows - a.shape[0]), (0, cols - a.shape[1])))

    return {
        "wet": pad2d(w_enc.T, Dp, Hp, compute_dtype),        # (Dp, Hp) = W_enc^T
        "wdt": pad2d(w_dec.T, Hp, Dp, compute_dtype),        # (Hp, Dp) = W_dec^T
        "be": pad2d(b_enc.reshape(1, -1), 1, Hp, jnp.float32),
        "bd": pad2d(b_dec.reshape(1, -1), 1, Dp, jnp.float32),
        "input_dim": int(input_dim),
        "hidden_dim": int(hidden_dim),
        "compute_dtype": jnp.dtype(compute_dtype),
    }


# ---------------------------------------------------------------------------
# Pallas kernel: one (row tile i, hidden tile h) grid step.
#   enc  = x_tile @ W_enc^T[:, h] + b_enc[h]          (f32 MXU accumulation)
#   act  = activation(enc)          -> encoded output tile (written directly)
#   stats partials: per-column positive counts + per-column act sums
#   acc += act @ W_dec^T[h, :]                         (f32 VMEM scratch)
#   on last h:  decoded = acc + b_dec
# ---------------------------------------------------------------------------
def _sae_kernel(x_ref, wet_ref, be_ref, wdt_ref, bd_ref,
                dec_ref, enc_ref, stats_ref, acc_ref, *,
                activation_type, sparsity_param, tm, rows_valid):
    h = pl.program_id(1)

    @pl.when(h == 0)
    def _():
        acc_ref[...] = jnp.zeros_like(acc_ref)

    x = x_ref[...]                                                  # (tm, Dp)
    enc = jnp.dot(x, wet_ref[...],
                  preferred_element_type=jnp.float32) + be_ref[...]

    # Static python branch -> only the chosen path is lowered.
    if activation_type == "relu":
        act = jnp.maximum(enc, 0.0)
    elif activation_type == "jump_relu":
        # Matches the PyTorch reference exactly: F.relu(x - sparsity_param).
        act = jnp.maximum(enc - sparsity_param, 0.0)
    else:
        # TODO(synk): 'topk' per-row activation needs an in-kernel top-k /
        # threshold search; not implemented in the fused kernel.
        raise NotImplementedError("topk activation not implemented in kernel")

    enc_ref[...] = act.astype(enc_ref.dtype)

    # ---- fused activation statistics (column partials for this row tile) ---
    # relu-family activations are >= 0, so (==0) is exactly (not > 0); the
    # zero-count / positive-count split done in the wrapper relies on that.
    pos = (act > 0.0).astype(jnp.float32)
    if rows_valid is not None:                 # mask rows padded past M
        rid = (jax.lax.broadcasted_iota(jnp.int32, (act.shape[0], 1), 0)
               + pl.program_id(0) * tm)
        mask = (rid < rows_valid).astype(jnp.float32)
        pos = pos * mask
        act_s = act * mask
    else:
        act_s = act
    pos_row = jnp.sum(pos, axis=0, keepdims=True)       # (1, th)
    sum_row = jnp.sum(act_s, axis=0, keepdims=True)     # (1, th)
    # stats tile layout: sublane 0 = positive counts, sublane 1 = act sums.
    sub = jax.lax.broadcasted_iota(jnp.int32, (8, 1), 0)
    stats_ref[0] = (jnp.where(sub == 0, pos_row, 0.0)
                    + jnp.where(sub == 1, sum_row, 0.0))

    acc_ref[...] += jnp.dot(act.astype(wdt_ref.dtype), wdt_ref[...],
                            preferred_element_type=jnp.float32)

    @pl.when(h == pl.num_programs(1) - 1)
    def _():
        dec_ref[...] = (acc_ref[...] + bd_ref[...]).astype(dec_ref.dtype)


# ---------------------------------------------------------------------------
# Wrapper: flatten, pad rows, pick tiles against a VMEM budget, call kernel.
# Pass `prepare_params(...)` output as `params` to avoid re-preparing weights
# on every call (raw params are accepted but prepared on the fly).
# ---------------------------------------------------------------------------
def sparse_autoencoder_forward(x, params, *, activation_type="relu",
                               sparsity_param=0.1, k=5,
                               compute_dtype=jnp.bfloat16,
                               encoded_dtype=None,
                               tm=512, th=512,
                               vmem_budget_bytes=56 << 20,
                               vmem_limit_bytes=None):
    prepared = params if "wet" in params else prepare_params(
        params, compute_dtype=compute_dtype)
    wet, wdt, be, bd = prepared["wet"], prepared["wdt"], prepared["be"], prepared["bd"]
    input_dim, hidden_dim = prepared["input_dim"], prepared["hidden_dim"]
    compute_dtype = prepared["compute_dtype"]
    Dp, Hp = wet.shape

    out_dtype = x.dtype
    enc_dtype = compute_dtype if encoded_dtype is None else jnp.dtype(encoded_dtype)

    # x.view(-1, input_dim) equivalent
    x2d = x.reshape(-1, input_dim)
    M = x2d.shape[0]
    Mp128 = _round_up(M, 128)

    # Row tile: as big as the budget allows (weights are re-streamed once per
    # row tile, so arithmetic intensity ~ tm), but keep n_i >= 2 when possible
    # so v7x's two TensorCores both get work on the "parallel" axis.
    tm_eff = min(_round_up(tm, 128), Mp128)
    if Mp128 >= 256 and tm_eff >= Mp128:
        tm_eff = max(128, (Mp128 // 2) // 128 * 128)

    th_eff = _pick_divisor_tile(Hp, th)

    cb = jnp.dtype(compute_dtype).itemsize
    dec_b = jnp.dtype(out_dtype).itemsize
    enc_b = jnp.dtype(enc_dtype).itemsize

    def working_set(tm_, th_):
        # double-buffered inputs/outputs + f32 accumulator scratch
        return (2 * tm_ * Dp * cb            # x tile
                + 2 * Dp * th_ * cb          # W_enc^T tile
                + 2 * th_ * Dp * cb          # W_dec^T tile
                + 2 * tm_ * Dp * dec_b       # decoded tile
                + 2 * tm_ * th_ * enc_b      # encoded tile
                + 2 * 8 * th_ * 4            # stats tile
                + 2 * 8 * (th_ + Dp) * 4     # biases (sublane padded)
                + tm_ * Dp * 4)              # f32 accumulator scratch

    # Auto-shrink tiles to the VMEM budget (v7x has only 64 MiB physical).
    while working_set(tm_eff, th_eff) > vmem_budget_bytes:
        if th_eff > 128:
            th_eff = _pick_divisor_tile(Hp, th_eff // 2)
        elif tm_eff > 128:
            tm_eff = max(128, (tm_eff // 2) // 128 * 128)
        else:
            break

    Mp = _round_up(M, tm_eff)
    n_i = Mp // tm_eff
    n_h = Hp // th_eff

    if vmem_limit_bytes is None:
        vmem_limit_bytes = min(
            max(int(working_set(tm_eff, th_eff) * 1.25) + (4 << 20), 32 << 20),
            120 << 20)

    x_p = jnp.pad(x2d.astype(compute_dtype),
                  ((0, Mp - M), (0, Dp - input_dim)))

    kernel = partial(_sae_kernel,
                     activation_type=activation_type,
                     sparsity_param=float(sparsity_param),
                     tm=tm_eff,
                     rows_valid=(M if Mp > M else None))

    cost = pl.CostEstimate(
        flops=int(4 * Mp * Dp * Hp),                       # two matmuls
        transcendentals=0,
        bytes_accessed=int(
            Mp * Dp * cb                                   # x (read once)
            + n_i * 2 * Dp * Hp * cb                       # weights per row tile
            + Mp * Dp * dec_b                              # decoded
            + Mp * Hp * enc_b                              # encoded
            + n_i * 8 * Hp * 4))                           # stats partials

    decoded_p, encoded_p, stats_p = pl.pallas_call(
        kernel,
        out_shape=(
            jax.ShapeDtypeStruct((Mp, Dp), out_dtype),     # decoded
            jax.ShapeDtypeStruct((Mp, Hp), enc_dtype),     # encoded_activated
            jax.ShapeDtypeStruct((n_i, 8, Hp), jnp.float32),  # stat partials
        ),
        grid_spec=pltpu.PrefetchScalarGridSpec(
            num_scalar_prefetch=0,
            grid=(n_i, n_h),
            in_specs=[
                pl.BlockSpec((tm_eff, Dp), lambda i, h: (i, 0)),      # x rows
                pl.BlockSpec((Dp, th_eff), lambda i, h: (0, h)),      # W_enc^T
                pl.BlockSpec((1, th_eff), lambda i, h: (0, h)),       # b_enc
                pl.BlockSpec((th_eff, Dp), lambda i, h: (h, 0)),      # W_dec^T
                pl.BlockSpec((1, Dp), lambda i, h: (0, 0)),           # b_dec
            ],
            out_specs=[
                pl.BlockSpec((tm_eff, Dp), lambda i, h: (i, 0)),      # decoded
                pl.BlockSpec((tm_eff, th_eff), lambda i, h: (i, h)),  # encoded
                pl.BlockSpec((1, 8, th_eff), lambda i, h: (i, 0, h)),  # stats
            ],
            scratch_shapes=[pltpu.VMEM((tm_eff, Dp), jnp.float32)],
        ),
        compiler_params=pltpu.CompilerParams(
            dimension_semantics=("parallel", "arbitrary"),
            vmem_limit_bytes=int(vmem_limit_bytes)),
        cost_estimate=cost,
    )(x_p, wet, be, wdt, bd)

    decoded = decoded_p[:M, :input_dim]
    encoded = encoded_p[:M, :hidden_dim]

    # Tiny finishing reductions over the fused per-tile partials (no extra
    # HBM pass over the full encoded tensor).  For relu-family activations,
    # (encoded == 0) is exactly (not encoded > 0), so sparsity = 1 - positives/N.
    pos_cols = jnp.sum(stats_p[:, 0, :hidden_dim], axis=0)   # (hidden_dim,)
    act_sum = jnp.sum(stats_p[:, 1, :hidden_dim])
    n_elems = float(M * hidden_dim)
    stats = {
        "mean": act_sum / n_elems,
        "sparsity": 1.0 - jnp.sum(pos_cols) / n_elems,
        "frequency": pos_cols / float(M),
    }
    return (decoded, encoded), stats


# ---------------------------------------------------------------------------
# Deterministic Xavier-uniform init (matches nn.init.xavier_uniform_ bounds).
# ---------------------------------------------------------------------------
def init_params(key, input_dim, hidden_dim, dtype=jnp.float32):
    k_enc, k_dec = jax.random.split(key)
    limit = (6.0 / (input_dim + hidden_dim)) ** 0.5
    w_enc = jax.random.uniform(k_enc, (hidden_dim, input_dim),
                               minval=-limit, maxval=limit, dtype=dtype)
    w_dec = jax.random.uniform(k_dec, (input_dim, hidden_dim),
                               minval=-limit, maxval=limit, dtype=dtype)
    return {
        "w_enc": w_enc,
        "b_enc": jnp.zeros((hidden_dim,), dtype),
        "w_dec": w_dec,
        "b_dec": jnp.zeros((input_dim,), dtype),
    }


def _reference_forward(x, params, compute_dtype=jnp.float32):
    D = params["w_enc"].shape[1]
    x2d = x.reshape(-1, D).astype(compute_dtype)
    enc = jnp.dot(x2d, params["w_enc"].T.astype(compute_dtype),
                  preferred_element_type=jnp.float32) + params["b_enc"]
    act = jnp.maximum(enc, 0.0)
    dec = jnp.dot(act.astype(compute_dtype),
                  params["w_dec"].T.astype(compute_dtype),
                  preferred_element_type=jnp.float32) + params["b_dec"]
    return dec, act


if __name__ == "__main__":
    input_dim = 16
    hidden_dim = 32

    key = jax.random.PRNGKey(0)
    k_x, k_p = jax.random.split(key)

    # x of shape (2, 4, 16, 16) -> flattened to (128, 16) inside forward
    x = jax.random.normal(k_x, (2, 4, 16, 16), dtype=jnp.float32)
    params = init_params(k_p, input_dim, hidden_dim)

    # --- float32 compute path: strict correctness check --------------------
    prep32 = prepare_params(params, compute_dtype=jnp.float32)
    (dec32, enc32), stats = sparse_autoencoder_forward(
        x, prep32, activation_type="relu", sparsity_param=0.1)
    jax.block_until_ready((dec32, enc32, stats["frequency"]))

    dec_ref32, enc_ref32 = _reference_forward(x, params, jnp.float32)
    assert dec32.shape == (128, input_dim)
    assert enc32.shape == (128, hidden_dim)
    assert jnp.allclose(dec32, dec_ref32, atol=1e-5, rtol=1e-5)
    assert jnp.allclose(enc32, enc_ref32, atol=1e-5, rtol=1e-5)

    # fused activation-stat reductions vs. direct recompute on the reference
    assert jnp.allclose(stats["mean"], jnp.mean(enc_ref32), atol=1e-5, rtol=1e-5)
    assert jnp.allclose(stats["sparsity"],
                        jnp.mean((enc_ref32 == 0).astype(jnp.float32)),
                        atol=1e-3)
    assert stats["frequency"].shape == (hidden_dim,)
    assert jnp.allclose(stats["frequency"],
                        jnp.mean((enc_ref32 > 0).astype(jnp.float32), axis=0),
                        atol=1e-2)

    # --- bfloat16 compute path (performance default on v5e/v6e/v7x) --------
    prep_bf = prepare_params(params, compute_dtype=jnp.bfloat16)
    (dec_bf, enc_bf), stats_bf = sparse_autoencoder_forward(
        x, prep_bf, activation_type="relu", sparsity_param=0.1)
    jax.block_until_ready((dec_bf, enc_bf))

    dec_refbf, enc_refbf = _reference_forward(x, params, jnp.bfloat16)
    assert enc_bf.dtype == jnp.bfloat16         # encoded stored in compute_dtype
    assert jnp.allclose(dec_bf.astype(jnp.float32), dec_refbf, atol=2e-2, rtol=2e-2)
    assert jnp.allclose(enc_bf.astype(jnp.float32), enc_refbf, atol=2e-2, rtol=2e-2)
    assert stats_bf["frequency"].shape == (hidden_dim,)

    print("KERNEL_OK")
</pallas_src>

<mosaic_0001>
module attributes {stable_mosaic.version = 11 : i64} {
  func.func @_sae_kernel(%arg0: i32, %arg1: i32, %arg2: memref<128x128xf32, #tpu.memory_space<vmem>>, %arg3: memref<128x128xf32, #tpu.memory_space<vmem>>, %arg4: memref<1x128xf32, #tpu.memory_space<vmem>>, %arg5: memref<128x128xf32, #tpu.memory_space<vmem>>, %arg6: memref<1x128xf32, #tpu.memory_space<vmem>>, %arg7: memref<128x128xf32, #tpu.memory_space<vmem>>, %arg8: memref<128x128xf32, #tpu.memory_space<vmem>>, %arg9: memref<1x8x128xf32, #tpu.memory_space<vmem>>, %arg10: memref<128x128xf32, #tpu.memory_space<vmem>>) attributes {dimension_semantics = [#tpu.dimension_semantics<parallel>, #tpu.dimension_semantics<arbitrary>], iteration_bounds = array<i64: 1, 1>, scalar_prefetch = 0 : i64, scratch_operands = 1 : i64, tpu.core_type = #tpu.core_type<tc>, window_params = [{transform_indices = @transform_0, window_bounds = array<i64: 128, 128>}, {transform_indices = @transform_1, window_bounds = array<i64: 128, 128>}, {transform_indices = @transform_2, window_bounds = array<i64: 1, 128>}, {transform_indices = @transform_3, window_bounds = array<i64: 128, 128>}, {pipeline_mode = #tpu.pipeline_mode<synchronous>, transform_indices = @transform_4, window_bounds = array<i64: 1, 128>}, {transform_indices = @transform_5, window_bounds = array<i64: 128, 128>}, {transform_indices = @transform_6, window_bounds = array<i64: 128, 128>}, {transform_indices = @transform_7, window_bounds = array<i64: 1, 8, 128>}]} {
    %c0_i32 = arith.constant 0 : i32
    %0 = arith.cmpi eq, %arg1, %c0_i32 : i32
    %1 = arith.extui %0 : i1 to i32
    %c0_i32_0 = arith.constant 0 : i32
    %2 = arith.cmpi ne, %1, %c0_i32_0 : i32
    scf.if %2 {
      %cst_27 = arith.constant 0.000000e+00 : f32
      %49 = vector.broadcast %cst_27 : f32 to vector<128x128xf32>
      %c0_28 = arith.constant 0 : index
      %c0_29 = arith.constant 0 : index
      %50 = vector.load %arg10[%c0_28, %c0_29] : memref<128x128xf32, #tpu.memory_space<vmem>>, vector<128x128xf32>
      tpu.vector_store %arg10[%c0_28, %c0_29], %49 {strides = array<i32>} : memref<128x128xf32, #tpu.memory_space<vmem>>, vector<128x128xf32>,
    } else {
    }
    %c0 = arith.constant 0 : index
    %c0_1 = arith.constant 0 : index
    %3 = vector.load %arg2[%c0, %c0_1] : memref<128x128xf32, #tpu.memory_space<vmem>>, vector<128x128xf32>
    %c0_2 = arith.constant 0 : index
    %c0_3 = arith.constant 0 : index
    %4 = vector.load %arg3[%c0_2, %c0_3] : memref<128x128xf32, #tpu.memory_space<vmem>>, vector<128x128xf32>
    %cst = arith.constant dense<0.000000e+00> : vector<128x128xf32>
    %5 = tpu.matmul %3, %4, %cst {dimension_numbers = #tpu.dot_dimension_numbers<[1], [0], [0], [1], [0, 0, 1, 1], [], []>} : vector<128x128xf32>, vector<128x128xf32>, vector<128x128xf32> -> vector<128x128xf32>
    %c0_4 = arith.constant 0 : index
    %c0_5 = arith.constant 0 : index
    %6 = vector.load %arg4[%c0_4, %c0_5] : memref<1x128xf32, #tpu.memory_space<vmem>>, vector<1x128xf32>
    %7 = vector.broadcast %6 : vector<1x128xf32> to vector<128x128xf32>
    %8 = arith.addf %5, %7 : vector<128x128xf32>
    %cst_6 = arith.constant 0.000000e+00 : f32
    %9 = vector.broadcast %cst_6 : f32 to vector<128x128xf32>
    %10 = arith.maximumf %8, %9 : vector<128x128xf32>
    %c0_7 = arith.constant 0 : index
    %c0_8 = arith.constant 0 : index
    %11 = vector.load %arg8[%c0_7, %c0_8] : memref<128x128xf32, #tpu.memory_space<vmem>>, vector<128x128xf32>
    tpu.vector_store %arg8[%c0_7, %c0_8], %10 {strides = array<i32>} : memref<128x128xf32, #tpu.memory_space<vmem>>, vector<128x128xf32>,
    %cst_9 = arith.constant 0.000000e+00 : f32
    %12 = vector.broadcast %cst_9 : f32 to vector<128x128xf32>
    %13 = arith.cmpf ogt, %10, %12 : vector<128x128xf32>
    %14 = arith.extui %13 : vector<128x128xi1> to vector<128x128xi32>
    %15 = arith.sitofp %14 : vector<128x128xi32> to vector<128x128xf32>
    %cst_10 = arith.constant dense<0.000000e+00> : vector<128xf32>
    %16 = vector.multi_reduction <add>, %15, %cst_10 [0] : vector<128x128xf32> to vector<128xf32>
    %17 = vector.shape_cast %16 : vector<128xf32> to vector<1x128xf32>
    %cst_11 = arith.constant dense<0.000000e+00> : vector<128xf32>
    %18 = vector.multi_reduction <add>, %10, %cst_11 [0] : vector<128x128xf32> to vector<128xf32>
    %19 = vector.shape_cast %18 : vector<128xf32> to vector<1x128xf32>
    %20 = tpu.iota {dimensions = array<i32: 0>} : vector<8x1xi32>
    %c0_i32_12 = arith.constant 0 : i32
    %21 = vector.broadcast %c0_i32_12 : i32 to vector<8x1xi32>
    %22 = arith.cmpi eq, %20, %21 : vector<8x1xi32>
    %cst_13 = arith.constant 0.000000e+00 : f32
    %23 = vector.shape_cast %22 : vector<8x1xi1> to vector<8x1xi1>
    %24 = vector.broadcast %23 : vector<8x1xi1> to vector<8x128xi1>
    %25 = vector.shape_cast %17 : vector<1x128xf32> to vector<1x128xf32>
    %26 = vector.broadcast %25 : vector<1x128xf32> to vector<8x128xf32>
    %27 = vector.broadcast %cst_13 : f32 to vector<8x128xf32>
    %28 = arith.select %24, %26, %27 : vector<8x128xi1>, vector<8x128xf32>
    %c1_i32 = arith.constant 1 : i32
    %29 = vector.broadcast %c1_i32 : i32 to vector<8x1xi32>
    %30 = arith.cmpi eq, %20, %29 : vector<8x1xi32>
    %cst_14 = arith.constant 0.000000e+00 : f32
    %31 = vector.shape_cast %30 : vector<8x1xi1> to vector<8x1xi1>
    %32 = vector.broadcast %31 : vector<8x1xi1> to vector<8x128xi1>
    %33 = vector.shape_cast %19 : vector<1x128xf32> to vector<1x128xf32>
    %34 = vector.broadcast %33 : vector<1x128xf32> to vector<8x128xf32>
    %35 = vector.broadcast %cst_14 : f32 to vector<8x128xf32>
    %36 = arith.select %32, %34, %35 : vector<8x128xi1>, vector<8x128xf32>
    %37 = arith.addf %28, %36 : vector<8x128xf32>
    %c0_15 = arith.constant 0 : index
    %c0_16 = arith.constant 0 : index
    %c0_17 = arith.constant 0 : index
    %38 = vector.load %arg9[%c0_15, %c0_16, %c0_17] : memref<1x8x128xf32, #tpu.memory_space<vmem>>, vector<1x8x128xf32>
    %39 = vector.shape_cast %38 : vector<1x8x128xf32> to vector<8x128xf32>
    %40 = vector.shape_cast %37 : vector<8x128xf32> to vector<1x8x128xf32>
    tpu.vector_store %arg9[%c0_15, %c0_16, %c0_17], %40 {strides = array<i32>} : memref<1x8x128xf32, #tpu.memory_space<vmem>>, vector<1x8x128xf32>,
    %c0_18 = arith.constant 0 : index
    %c0_19 = arith.constant 0 : index
    %41 = vector.load %arg10[%c0_18, %c0_19] : memref<128x128xf32, #tpu.memory_space<vmem>>, vector<128x128xf32>
    %c0_20 = arith.constant 0 : index
    %c0_21 = arith.constant 0 : index
    %42 = vector.load %arg5[%c0_20, %c0_21] : memref<128x128xf32, #tpu.memory_space<vmem>>, vector<128x128xf32>
    %cst_22 = arith.constant dense<0.000000e+00> : vector<128x128xf32>
    %43 = tpu.matmul %10, %42, %cst_22 {dimension_numbers = #tpu.dot_dimension_numbers<[1], [0], [0], [1], [0, 0, 1, 1], [], []>} : vector<128x128xf32>, vector<128x128xf32>, vector<128x128xf32> -> vector<128x128xf32>
    %44 = arith.addf %41, %43 : vector<128x128xf32>
    %c0_23 = arith.constant 0 : index
    %c0_24 = arith.constant 0 : index
    %45 = vector.load %arg10[%c0_23, %c0_24] : memref<128x128xf32, #tpu.memory_space<vmem>>, vector<128x128xf32>
    tpu.vector_store %arg10[%c0_23, %c0_24], %44 {strides = array<i32>} : memref<128x128xf32, #tpu.memory_space<vmem>>, vector<128x128xf32>,
    %c0_i32_25 = arith.constant 0 : i32
    %46 = arith.cmpi eq, %arg1, %c0_i32_25 : i32
    %47 = arith.extui %46 : i1 to i32
    %c0_i32_26 = arith.constant 0 : i32
    %48 = arith.cmpi ne, %47, %c0_i32_26 : i32
    scf.if %48 {
      %c0_27 = arith.constant 0 : index
      %c0_28 = arith.constant 0 : index
      %49 = vector.load %arg10[%c0_27, %c0_28] : memref<128x128xf32, #tpu.memory_space<vmem>>, vector<128x128xf32>
      %c0_29 = arith.constant 0 : index
      %c0_30 = arith.constant 0 : index
      %50 = vector.load %arg6[%c0_29, %c0_30] : memref<1x128xf32, #tpu.memory_space<vmem>>, vector<1x128xf32>
      %51 = vector.broadcast %50 : vector<1x128xf32> to vector<128x128xf32>
      %52 = arith.addf %49, %51 : vector<128x128xf32>
      %c0_31 = arith.constant 0 : index
      %c0_32 = arith.constant 0 : index
      %53 = vector.load %arg7[%c0_31, %c0_32] : memref<128x128xf32, #tpu.memory_space<vmem>>, vector<128x128xf32>
      tpu.vector_store %arg7[%c0_31, %c0_32], %52 {strides = array<i32>} : memref<128x128xf32, #tpu.memory_space<vmem>>, vector<128x128xf32>,
    } else {
    }
    return
  }
  func.func @transform_0(%arg0: i32, %arg1: i32) -> (i32, i32) {
    %c0_i32 = arith.constant 0 : i32
    %c0_i32_0 = arith.constant 0 : i32
    return %arg0, %c0_i32 : i32, i32
  }
  func.func @transform_1(%arg0: i32, %arg1: i32) -> (i32, i32) {
    %c0_i32 = arith.constant 0 : i32
    %c0_i32_0 = arith.constant 0 : i32
    return %c0_i32, %arg1 : i32, i32
  }
  func.func @transform_2(%arg0: i32, %arg1: i32) -> (i32, i32) {
    %c0_i32 = arith.constant 0 : i32
    %c0_i32_0 = arith.constant 0 : i32
    return %c0_i32, %arg1 : i32, i32
  }
  func.func @transform_3(%arg0: i32, %arg1: i32) -> (i32, i32) {
    %c0_i32 = arith.constant 0 : i32
    %c0_i32_0 = arith.constant 0 : i32
    return %arg1, %c0_i32 : i32, i32
  }
  func.func @transform_4(%arg0: i32, %arg1: i32) -> (i32, i32) {
    %c0_i32 = arith.constant 0 : i32
    %c0_i32_0 = arith.constant 0 : i32
    %c0_i32_1 = arith.constant 0 : i32
    return %c0_i32, %c0_i32_0 : i32, i32
  }
  func.func @transform_5(%arg0: i32, %arg1: i32) -> (i32, i32) {
    %c0_i32 = arith.constant 0 : i32
    %c0_i32_0 = arith.constant 0 : i32
    return %arg0, %c0_i32 : i32, i32
  }
  func.func @transform_6(%arg0: i32, %arg1: i32) -> (i32, i32) {
    %c0_i32 = arith.constant 0 : i32
    return %arg0, %arg1 : i32, i32
  }
  func.func @transform_7(%arg0: i32, %arg1: i32) -> (i32, i32, i32) {
    %c0_i32 = arith.constant 0 : i32
    %c0_i32_0 = arith.constant 0 : i32
    return %arg0, %c0_i32, %arg1 : i32, i32, i32
  }
}

</mosaic_0001>

<llo_original>
// kernel: tpu_custom_call.1
$region0: #{tpu_custom_call.1}
  #allocation0 [shape = 'u32[]', space=smem, size = 0x4, offset = 0x4, fixed_abs, tag = 'smem constant byte address 0x4 - core index']
  #allocation1 [shape = 'u32[144,128]{1,0:T(1,128)}', space=vmem, size = 0x12000, scoped, tag = 'internal scratch']
  #allocation2 [shape = 'f32[128,128]{1,0:T(8,128)}', space=vmem, size = 0x10000, scoped, tag = 'scratch operand']
  %s0 = inlined_call_operand.hbm [shape: f32[128,128], index: 0, kind: input, shape index: {}]
  %s1 = inlined_call_operand.hbm [shape: f32[128,128], index: 1, kind: input, shape index: {}]
  %s2 = inlined_call_operand.vmem [shape: f32[1,128], index: 2, kind: input, shape index: {}]
  %s3 = inlined_call_operand.hbm [shape: f32[128,128], index: 3, kind: input, shape index: {}]
  %s4 = inlined_call_operand.vmem [shape: f32[1,128], index: 4, kind: input, shape index: {}]
  %s5 = inlined_call_operand.hbm [shape: f32[128,128], index: 5, kind: output, shape index: {0}]
  %s6 = inlined_call_operand.hbm [shape: f32[128,128], index: 6, kind: output, shape index: {1}]
  %s7 = inlined_call_operand.hbm [shape: f32[1,8,128], index: 7, kind: output, shape index: {2}]
  %8 = xla_tuple %s5, %s6, %s7
  %s9 = sld [smem:[#allocation0]]
  $region66: #{tpu_custom_call.1} parent=0
    _
  %s11 = ssub.s32 1, %s9
  %s12 = scalar_select 0, %s11, %s9
  $region1: #{tpu_custom_call.1} parent=0
    #allocation3 [shape = 'u8[65536]{0}', space=vmem, size = 0x10000, scoped, tag = 'input window, operand 0, single buffered']
    #allocation4 [shape = 's32[1]{0}', space=sflag, size = 0x4, scoped, tag = 'scoped memory for tpu_custom_call.1']
    #allocation5 [shape = 's32[1]{0}', space=sflag, size = 0x4, scoped, tag = 'scoped memory for tpu_custom_call.1']
    #allocation6 [shape = 'u8[65536]{0}', space=vmem, size = 0x10000, scoped, tag = 'input window, operand 1, single buffered']
    #allocation7 [shape = 's32[1]{0}', space=sflag, size = 0x4, scoped, tag = 'scoped memory for tpu_custom_call.1']
    #allocation8 [shape = 'u8[65536]{0}', space=vmem, size = 0x10000, scoped, tag = 'input window, operand 3, single buffered']
    #allocation9 [shape = 'u8[65536]{0}', space=vmem, size = 0x10000, scoped, tag = 'output window, operand 0, single buffered']
    #allocation10 [shape = 'u8[65536]{0}', space=vmem, size = 0x10000, scoped, tag = 'output window, operand 1, single buffered']
    #allocation11 [shape = 's32[1]{0}', space=sflag, size = 0x4, scoped, tag = 'scoped memory for tpu_custom_call.1']
    #allocation12 [shape = 'u8[4096]{0}', space=vmem, size = 0x1000, scoped, tag = 'output window, operand 2, single buffered']
    %13 = vsyncpa [#allocation4], 0
    %14 = vsyncpa [#allocation7], 0
    %15 = vsyncpa [#allocation5], 0
    %16 = vsyncpa [#allocation11], 0
    // Predicated region
    $region2: #{tpu_custom_call.1} parent=1 // pred_check
      _
    $region3: #{tpu_custom_call.1} parent=1 // pred_check_branch
      %18 = sbr.rel (0) target = $region5
    $region4: #{tpu_custom_call.1} parent=1 // pred_region
      %s20 = ssub.s32 2048, 2048
      %21 = vsyncadd [#allocation4], %s20
      %s22 = sshll.u32 [#allocation3], 4
      %s23 = int_to_ptr.vmem [resolvable:$true] %s22
      %28 = dma.hbm_to_vmem [thread:$0]  %s0, 2048, %s23, [#allocation4], 128, 128, 8
    $region5: #{tpu_custom_call.1} parent=1 // pred_fallthru
      _
    // Predicated region
    $region6: #{tpu_custom_call.1} parent=1 // pred_check
      _
    $region7: #{tpu_custom_call.1} parent=1 // pred_check_branch
      %30 = sbr.rel (0) target = $region9
    $region8: #{tpu_custom_call.1} parent=1 // pred_region
      %s32 = ssub.s32 2048, 2048
      %33 = vsyncadd [#allocation7], %s32
      %s34 = sshll.u32 [#allocation6], 4
      %s35 = int_to_ptr.vmem [resolvable:$true] %s34
      %40 = dma.hbm_to_vmem [thread:$0]  %s1, 2048, %s35, [#allocation7], 128, 128, 8
    $region9: #{tpu_custom_call.1} parent=1 // pred_fallthru
      _
    // Predicated region
    $region10: #{tpu_custom_call.1} parent=1 // pred_check
      _
    $region11: #{tpu_custom_call.1} parent=1 // pred_check_branch
      %42 = sbr.rel (0) target = $region13
    $region12: #{tpu_custom_call.1} parent=1 // pred_region
      _
    $region13: #{tpu_custom_call.1} parent=1 // pred_fallthru
      _
    // Predicated region
    $region14: #{tpu_custom_call.1} parent=1 // pred_check
      _
    $region15: #{tpu_custom_call.1} parent=1 // pred_check_branch
      %44 = sbr.rel (0) target = $region17
    $region16: #{tpu_custom_call.1} parent=1 // pred_region
      %s46 = ssub.s32 2048, 2048
      %47 = vsyncadd [#allocation7], %s46
      %s48 = sshll.u32 [#allocation8], 4
      %s49 = int_to_ptr.vmem [resolvable:$true] %s48
      %54 = dma.hbm_to_vmem [thread:$0]  %s3, 2048, %s49, [#allocation7], 128, 128, 8
    $region17: #{tpu_custom_call.1} parent=1 // pred_fallthru
      _
    // Predicated region
    $region18: #{tpu_custom_call.1} parent=1 // pred_check
      _
    $region19: #{tpu_custom_call.1} parent=1 // pred_check_branch
      %56 = sbr.rel (0) target = $region21
    $region20: #{tpu_custom_call.1} parent=1 // pred_region
      _
    $region21: #{tpu_custom_call.1} parent=1 // pred_fallthru
      _
    // Predicated region
    $region22: #{tpu_custom_call.1} parent=1 // pred_check
      _
    $region23: #{tpu_custom_call.1} parent=1 // pred_check_branch
      %58 = sbr.rel (0) target = $region25
    $region24: #{tpu_custom_call.1} parent=1 // pred_region
      %59 = dma.done [#allocation4], 2048
    $region25: #{tpu_custom_call.1} parent=1 // pred_fallthru
      _
    // Predicated region
    $region26: #{tpu_custom_call.1} parent=1 // pred_check
      _
    $region27: #{tpu_custom_call.1} parent=1 // pred_check_branch
      %61 = sbr.rel (0) target = $region29
    $region28: #{tpu_custom_call.1} parent=1 // pred_region
      %62 = dma.done [#allocation7], 2048
    $region29: #{tpu_custom_call.1} parent=1 // pred_fallthru
      _
    // Predicated region
    $region30: #{tpu_custom_call.1} parent=1 // pred_check
      _
    $region31: #{tpu_custom_call.1} parent=1 // pred_check_branch
      %64 = sbr.rel (0) target = $region33
    $region32: #{tpu_custom_call.1} parent=1 // pred_region
      %65 = dma.done [#allocation7], 2048
    $region33: #{tpu_custom_call.1} parent=1 // pred_fallthru
      _
    %p66 = scmp.eq.s32.totalorder 0, 0
    // Predicated region
    $region34: #{tpu_custom_call.1} parent=1 // pred_check
      %p67 = pneg %p66
    $region35: #{tpu_custom_call.1} parent=1 // pred_check_branch
      %69 = sbr.rel (%p67) target = $region37
    $region36: #{tpu_custom_call.1} parent=1 // pred_region
      %70 = vst [vmem:[#allocation2] sm:$0xff] 0.0
      %71 = vst [vmem:[#allocation2 + $0x8] sm:$0xff] 0.0
      %72 = vst [vmem:[#allocation2 + $0x10] sm:$0xff] 0.0
      %73 = vst [vmem:[#allocation2 + $0x18] sm:$0xff] 0.0
      %74 = vst [vmem:[#allocation2 + $0x20] sm:$0xff] 0.0
      %75 = vst [vmem:[#allocation2 + $0x28] sm:$0xff] 0.0
      %76 = vst [vmem:[#allocation2 + $0x30] sm:$0xff] 0.0
      %77 = vst [vmem:[#allocation2 + $0x38] sm:$0xff] 0.0
      %78 = vst [vmem:[#allocation2 + $0x40] sm:$0xff] 0.0
      %79 = vst [vmem:[#allocation2 + $0x48] sm:$0xff] 0.0
      %80 = vst [vmem:[#allocation2 + $0x50] sm:$0xff] 0.0
      %81 = vst [vmem:[#allocation2 + $0x58] sm:$0xff] 0.0
      %82 = vst [vmem:[#allocation2 + $0x60] sm:$0xff] 0.0
      %83 = vst [vmem:[#allocation2 + $0x68] sm:$0xff] 0.0
      %84 = vst [vmem:[#allocation2 + $0x70] sm:$0xff] 0.0
      %85 = vst [vmem:[#allocation2 + $0x78] sm:$0xff] 0.0
    $region37: #{tpu_custom_call.1} parent=1 // pred_fallthru
      _
    %v86 = vld [vmem:[#allocation3] sm:$0xff]
    %v87 = vld [vmem:[#allocation3 + $0x8] sm:$0xff]
    %v88 = vld [vmem:[#allocation3 + $0x10] sm:$0xff]
    %v89 = vld [vmem:[#allocation3 + $0x18] sm:$0xff]
    %v90 = vld [vmem:[#allocation3 + $0x20] sm:$0xff]
    %v91 = vld [vmem:[#allocation3 + $0x28] sm:$0xff]
    %v92 = vld [vmem:[#allocation3 + $0x30] sm:$0xff]
    %v93 = vld [vmem:[#allocation3 + $0x38] sm:$0xff]
    %v94 = vld [vmem:[#allocation3 + $0x40] sm:$0xff]
    %v95 = vld [vmem:[#allocation3 + $0x48] sm:$0xff]
    %v96 = vld [vmem:[#allocation3 + $0x50] sm:$0xff]
    %v97 = vld [vmem:[#allocation3 + $0x58] sm:$0xff]
    %v98 = vld [vmem:[#allocation3 + $0x60] sm:$0xff]
    %v99 = vld [vmem:[#allocation3 + $0x68] sm:$0xff]
    %v100 = vld [vmem:[#allocation3 + $0x70] sm:$0xff]
    %v101 = vld [vmem:[#allocation3 + $0x78] sm:$0xff]
    %v102 = vld [vmem:[#allocation6] sm:$0xff]
    %v103 = vld [vmem:[#allocation6 + $0x8] sm:$0xff]
    %v104 = vld [vmem:[#allocation6 + $0x10] sm:$0xff]
    %v105 = vld [vmem:[#allocation6 + $0x18] sm:$0xff]
    %v106 = vld [vmem:[#allocation6 + $0x20] sm:$0xff]
    %v107 = vld [vmem:[#allocation6 + $0x28] sm:$0xff]
    %v108 = vld [vmem:[#allocation6 + $0x30] sm:$0xff]
    %v109 = vld [vmem:[#allocation6 + $0x38] sm:$0xff]
    %v110 = vld [vmem:[#allocation6 + $0x40] sm:$0xff]
    %v111 = vld [vmem:[#allocation6 + $0x48] sm:$0xff]
    %v112 = vld [vmem:[#allocation6 + $0x50] sm:$0xff]
    %v113 = vld [vmem:[#allocation6 + $0x58] sm:$0xff]
    %v114 = vld [vmem:[#allocation6 + $0x60] sm:$0xff]
    %v115 = vld [vmem:[#allocation6 + $0x68] sm:$0xff]
    %v116 = vld [vmem:[#allocation6 + $0x70] sm:$0xff]
    %v117 = vld [vmem:[#allocation6 + $0x78] sm:$0xff]
    %v118 = vld [vmem:[%s2] sm:$0x1]
    %v120 = vlaneseq
    %v121 = vshrl.u32 %v120, 7
    %v122 = vsub.s32 0, %v121
    %v123 = vrot.slane %v118, %v122
    %125 = vmatprep.subr.mxu0 0.0
    %126 = vmatpush1.msra.mxu0 %v102
    %127 = vmatprep.subr.mxu0 0.0
    %128 = vmatpush1.msra.mxu0 %v103
    %129 = vmatprep.subr.mxu0 0.0
    %130 = vmatpush1.msra.mxu0 %v104
    %131 = vmatprep.subr.mxu0 0.0
    %132 = vmatpush1.msra.mxu0 %v105
    %133 = vmatprep.subr.mxu0 0.0
    %134 = vmatpush1.msra.mxu0 %v106
    %135 = vmatprep.subr.mxu0 0.0
    %136 = vmatpush1.msra.mxu0 %v107
    %137 = vmatprep.subr.mxu0 0.0
    %138 = vmatpush1.msra.mxu0 %v108
    %139 = vmatprep.subr.mxu0 0.0
    %140 = vmatpush1.msra.mxu0 %v109
    %141 = vmatprep.subr.mxu0 0.0
    %142 = vmatpush1.msra.mxu0 %v110
    %143 = vmatprep.subr.mxu0 0.0
    %144 = vmatpush1.msra.mxu0 %v111
    %145 = vmatprep.subr.mxu0 0.0
    %146 = vmatpush1.msra.mxu0 %v112
    %147 = vmatprep.subr.mxu0 0.0
    %148 = vmatpush1.msra.mxu0 %v113
    %149 = vmatprep.subr.mxu0 0.0
    %150 = vmatpush1.msra.mxu0 %v114
    %151 = vmatprep.subr.mxu0 0.0
    %152 = vmatpush1.msra.mxu0 %v115
    %153 = vmatprep.subr.mxu0 0.0
    %154 = vmatpush1.msra.mxu0 %v116
    %155 = vmatprep.subr.mxu0 0.0
    %156 = vmatpush1.msra.mxu0 %v117
    %157 = vmatprep.subr.mxu0 0.0
    %158 = vmatpush1.msra.mxu0 0.0
    %159 = vmatprep.subr.mxu0 0.0
    %160 = vmatpush1.msra.mxu0 0.0
    %161 = vmatprep.subr.mxu0 0.0
    %162 = vmatpush1.msra.mxu0 0.0
    %163 = vmatprep.subr.mxu0 0.0
    %164 = vmatpush1.msra.mxu0 0.0
    %165 = vmatprep.subr.mxu0 0.0
    %166 = vmatpush1.msra.mxu0 0.0
    %167 = vmatprep.subr.mxu0 0.0
    %168 = vmatpush1.msra.mxu0 0.0
    %169 = vmatprep.subr.mxu0 0.0
    %170 = vmatpush1.msra.mxu0 0.0
    %171 = vmatprep.subr.mxu0 0.0
    %172 = vmatpush1.msra.mxu0 0.0
    %173 = vmatprep.subr.mxu0 0.0
    %174 = vmatpush1.msra.mxu0 0.0
    %175 = vmatprep.subr.mxu0 0.0
    %176 = vmatpush1.msra.mxu0 0.0
    %177 = vmatprep.subr.mxu0 0.0
    %178 = vmatpush1.msra.mxu0 0.0
    %179 = vmatprep.subr.mxu0 0.0
    %180 = vmatpush1.msra.mxu0 0.0
    %181 = vmatprep.subr.mxu0 0.0
    %182 = vmatpush1.msra.mxu0 0.0
    %183 = vmatprep.subr.mxu0 0.0
    %184 = vmatpush1.msra.mxu0 0.0
    %185 = vmatprep.subr.mxu0 0.0
    %186 = vmatpush1.msra.mxu0 0.0
    %187 = vmatprep.subr.mxu0 0.0
    %188 = vmatpush1.msra.mxu0 0.0
    %189 = vmatprep.mubr.f32.mxu0 0.0
    %190 = vmatmul.mubr.f32.gmra.mrb[0].mxu0 %v86
    %v191 = vpop.f32.mrb[0].mxu0
    %v192 = vadd.f32 %v123, %v191
    %v193 = vpop.f32.mrb[0].mxu0
    %194 = vmatprep.mubr.f32.mxu0 0.0
    %195 = vmatmul.mubr.f32.gmra.mrb[0].mxu0 %v87
    %v196 = vpop.f32.mrb[0].mxu0
    %v197 = vadd.f32 %v123, %v196
    %v198 = vpop.f32.mrb[0].mxu0
    %199 = vmatprep.mubr.f32.mxu0 0.0
    %200 = vmatmul.mubr.f32.gmra.mrb[0].mxu0 %v88
    %v201 = vpop.f32.mrb[0].mxu0
    %v202 = vadd.f32 %v123, %v201
    %v203 = vpop.f32.mrb[0].mxu0
    %204 = vmatprep.mubr.f32.mxu0 0.0
    %205 = vmatmul.mubr.f32.gmra.mrb[0].mxu0 %v89
    %v206 = vpop.f32.mrb[0].mxu0
    %v207 = vadd.f32 %v123, %v206
    %v208 = vpop.f32.mrb[0].mxu0
    %209 = vmatprep.mubr.f32.mxu0 0.0
    %210 = vmatmul.mubr.f32.gmra.mrb[0].mxu0 %v90
    %v211 = vpop.f32.mrb[0].mxu0
    %v212 = vadd.f32 %v123, %v211
    %v213 = vpop.f32.mrb[0].mxu0
    %214 = vmatprep.mubr.f32.mxu0 0.0
    %215 = vmatmul.mubr.f32.gmra.mrb[0].mxu0 %v91
    %v216 = vpop.f32.mrb[0].mxu0
    %v217 = vadd.f32 %v123, %v216
    %v218 = vpop.f32.mrb[0].mxu0
    %219 = vmatprep.mubr.f32.mxu0 0.0
    %220 = vmatmul.mubr.f32.gmra.mrb[0].mxu0 %v92
    %v221 = vpop.f32.mrb[0].mxu0
    %v222 = vadd.f32 %v123, %v221
    %v223 = vpop.f32.mrb[0].mxu0
    %224 = vmatprep.mubr.f32.mxu0 0.0
    %225 = vmatmul.mubr.f32.gmra.mrb[0].mxu0 %v93
    %v226 = vpop.f32.mrb[0].mxu0
    %v227 = vadd.f32 %v123, %v226
    %v228 = vpop.f32.mrb[0].mxu0
    %229 = vmatprep.mubr.f32.mxu0 0.0
    %230 = vmatmul.mubr.f32.gmra.mrb[0].mxu0 %v94
    %v231 = vpop.f32.mrb[0].mxu0
    %v232 = vadd.f32 %v123, %v231
    %v233 = vpop.f32.mrb[0].mxu0
    %234 = vmatprep.mubr.f32.mxu0 0.0
    %235 = vmatmul.mubr.f32.gmra.mrb[0].mxu0 %v95
    %v236 = vpop.f32.mrb[0].mxu0
    %v237 = vadd.f32 %v123, %v236
    %v238 = vpop.f32.mrb[0].mxu0
    %239 = vmatprep.mubr.f32.mxu0 0.0
    %240 = vmatmul.mubr.f32.gmra.mrb[0].mxu0 %v96
    %v241 = vpop.f32.mrb[0].mxu0
    %v242 = vadd.f32 %v123, %v241
    %v243 = vpop.f32.mrb[0].mxu0
    %244 = vmatprep.mubr.f32.mxu0 0.0
    %245 = vmatmul.mubr.f32.gmra.mrb[0].mxu0 %v97
    %v246 = vpop.f32.mrb[0].mxu0
    %v247 = vadd.f32 %v123, %v246
    %v248 = vpop.f32.mrb[0].mxu0
    %249 = vmatprep.mubr.f32.mxu0 0.0
    %250 = vmatmul.mubr.f32.gmra.mrb[0].mxu0 %v98
    %v251 = vpop.f32.mrb[0].mxu0
    %v252 = vadd.f32 %v123, %v251
    %v253 = vpop.f32.mrb[0].mxu0
    %254 = vmatprep.mubr.f32.mxu0 0.0
    %255 = vmatmul.mubr.f32.gmra.mrb[0].mxu0 %v99
    %v256 = vpop.f32.mrb[0].mxu0
    %v257 = vadd.f32 %v123, %v256
    %v258 = vpop.f32.mrb[0].mxu0
    %259 = vmatprep.mubr.f32.mxu0 0.0
    %260 = vmatmul.mubr.f32.gmra.mrb[0].mxu0 %v100
    %v261 = vpop.f32.mrb[0].mxu0
    %v262 = vadd.f32 %v123, %v261
    %v263 = vpop.f32.mrb[0].mxu0
    %264 = vmatprep.mubr.f32.mxu0 0.0
    %265 = vmatmul.mubr.f32.gmra.mrb[0].mxu0 %v101
    %v266 = vpop.f32.mrb[0].mxu0
    %v267 = vadd.f32 %v123, %v266
    %v268 = vpop.f32.mrb[0].mxu0
    %269 = vdwg.mxu0
    %v270 = vmax.f32 %v192, 0.0
    %v271 = vmax.f32 %v197, 0.0
    %v272 = vmax.f32 %v202, 0.0
    %v273 = vmax.f32 %v207, 0.0
    %v274 = vmax.f32 %v212, 0.0
    %v275 = vmax.f32 %v217, 0.0
    %v276 = vmax.f32 %v222, 0.0
    %v277 = vmax.f32 %v227, 0.0
    %v278 = vmax.f32 %v232, 0.0
    %v279 = vmax.f32 %v237, 0.0
    %v280 = vmax.f32 %v242, 0.0
    %v281 = vmax.f32 %v247, 0.0
    %v282 = vmax.f32 %v252, 0.0
    %v283 = vmax.f32 %v257, 0.0
    %v284 = vmax.f32 %v262, 0.0
    %v285 = vmax.f32 %v267, 0.0
    %286 = vst [vmem:[#allocation10] sm:$0xff] %v270
    %287 = vst [vmem:[#allocation10 + $0x8] sm:$0xff] %v271
    %288 = vst [vmem:[#allocation10 + $0x10] sm:$0xff] %v272
    %289 = vst [vmem:[#allocation10 + $0x18] sm:$0xff] %v273
    %290 = vst [vmem:[#allocation10 + $0x20] sm:$0xff] %v274
    %291 = vst [vmem:[#allocation10 + $0x28] sm:$0xff] %v275
    %292 = vst [vmem:[#allocation10 + $0x30] sm:$0xff] %v276
    %293 = vst [vmem:[#allocation10 + $0x38] sm:$0xff] %v277
    %294 = vst [vmem:[#allocation10 + $0x40] sm:$0xff] %v278
    %295 = vst [vmem:[#allocation10 + $0x48] sm:$0xff] %v279
    %296 = vst [vmem:[#allocation10 + $0x50] sm:$0xff] %v280
    %297 = vst [vmem:[#allocation10 + $0x58] sm:$0xff] %v281
    %298 = vst [vmem:[#allocation10 + $0x60] sm:$0xff] %v282
    %299 = vst [vmem:[#allocation10 + $0x68] sm:$0xff] %v283
    %300 = vst [vmem:[#allocation10 + $0x70] sm:$0xff] %v284
    %301 = vst [vmem:[#allocation10 + $0x78] sm:$0xff] %v285
    %vm302 = vcmp.gt.f32.partialorder %v270, 0.0
    %vm303 = vcmp.gt.f32.partialorder %v271, 0.0
    %vm304 = vcmp.gt.f32.partialorder %v272, 0.0
    %vm305 = vcmp.gt.f32.partialorder %v273, 0.0
    %vm306 = vcmp.gt.f32.partialorder %v274, 0.0
    %vm307 = vcmp.gt.f32.partialorder %v275, 0.0
    %vm308 = vcmp.gt.f32.partialorder %v276, 0.0
    %vm309 = vcmp.gt.f32.partialorder %v277, 0.0
    %vm310 = vcmp.gt.f32.partialorder %v278, 0.0
    %vm311 = vcmp.gt.f32.partialorder %v279, 0.0
    %vm312 = vcmp.gt.f32.partialorder %v280, 0.0
    %vm313 = vcmp.gt.f32.partialorder %v281, 0.0
    %vm314 = vcmp.gt.f32.partialorder %v282, 0.0
    %vm315 = vcmp.gt.f32.partialorder %v283, 0.0
    %vm316 = vcmp.gt.f32.partialorder %v284, 0.0
    %vm317 = vcmp.gt.f32.partialorder %v285, 0.0
    %v318 = vsel %vm302, 1, 0
    %v319 = vsel %vm303, 1, 0
    %v320 = vsel %vm304, 1, 0
    %v321 = vsel %vm305, 1, 0
    %v322 = vsel %vm306, 1, 0
    %v323 = vsel %vm307, 1, 0
    %v324 = vsel %vm308, 1, 0
    %v325 = vsel %vm309, 1, 0
    %v326 = vsel %vm310, 1, 0
    %v327 = vsel %vm311, 1, 0
    %v328 = vsel %vm312, 1, 0
    %v329 = vsel %vm313, 1, 0
    %v330 = vsel %vm314, 1, 0
    %v331 = vsel %vm315, 1, 0
    %v332 = vsel %vm316, 1, 0
    %v333 = vsel %vm317, 1, 0
    %v334 = vcvt.s32.f32 %v318
    %v335 = vcvt.s32.f32 %v319
    %v336 = vcvt.s32.f32 %v320
    %v337 = vcvt.s32.f32 %v321
    %v338 = vcvt.s32.f32 %v322
    %v339 = vcvt.s32.f32 %v323
    %v340 = vcvt.s32.f32 %v324
    %v341 = vcvt.s32.f32 %v325
    %v342 = vcvt.s32.f32 %v326
    %v343 = vcvt.s32.f32 %v327
    %v344 = vcvt.s32.f32 %v328
    %v345 = vcvt.s32.f32 %v329
    %v346 = vcvt.s32.f32 %v330
    %v347 = vcvt.s32.f32 %v331
    %v348 = vcvt.s32.f32 %v332
    %v349 = vcvt.s32.f32 %v333
    %v350 = vadd.f32 %v334, %v335
    %v351 = vadd.f32 %v350, %v336
    %v352 = vadd.f32 %v351, %v337
    %v353 = vadd.f32 %v352, %v338
    %v354 = vadd.f32 %v353, %v339
    %v355 = vadd.f32 %v354, %v340
    %v356 = vadd.f32 %v355, %v341
    %v357 = vadd.f32 %v356, %v342
    %v358 = vadd.f32 %v357, %v343
    %v359 = vadd.f32 %v358, %v344
    %v360 = vadd.f32 %v359, %v345
    %v361 = vadd.f32 %v360, %v346
    %v362 = vadd.f32 %v361, %v347
    %v363 = vadd.f32 %v362, %v348
    %v364 = vadd.f32 %v363, %v349
    %v365 = vrot.slane %v364, 4
    %v366 = vadd.f32 %v364, %v365
    %v367 = vrot.slane %v366, 2
    %v368 = vadd.f32 %v366, %v367
    %v369 = vrot.slane %v368, 1
    %v370 = vadd.f32 %v368, %v369
    %v371 = vadd.f32 %v270, %v271
    %v372 = vadd.f32 %v371, %v272
    %v373 = vadd.f32 %v372, %v273
    %v374 = vadd.f32 %v373, %v274
    %v375 = vadd.f32 %v374, %v275
    %v376 = vadd.f32 %v375, %v276
    %v377 = vadd.f32 %v376, %v277
    %v378 = vadd.f32 %v377, %v278
    %v379 = vadd.f32 %v378, %v279
    %v380 = vadd.f32 %v379, %v280
    %v381 = vadd.f32 %v380, %v281
    %v382 = vadd.f32 %v381, %v282
    %v383 = vadd.f32 %v382, %v283
    %v384 = vadd.f32 %v383, %v284
    %v385 = vadd.f32 %v384, %v285
    %v386 = vrot.slane %v385, 4
    %v387 = vadd.f32 %v385, %v386
    %v388 = vrot.slane %v387, 2
    %v389 = vadd.f32 %v387, %v388
    %v390 = vrot.slane %v389, 1
    %v391 = vadd.f32 %v389, %v390
    %v392 = vlaneseq
    %v393 = vshrl.u32 %v392, 7
    %vm394 = vcmp.eq.s32.totalorder %v393, 0
    %v395 = vsel %vm394, 1, 0
    %vm396 = vcmp.eq.s32.totalorder %v395, 1
    %v397 = vsel %vm396, %v370, 0.0
    %vm398 = vcmp.eq.s32.totalorder %v393, 1
    %v399 = vsel %vm398, 1, 0
    %vm400 = vcmp.eq.s32.totalorder %v399, 1
    %v401 = vsel %vm400, %v391, 0.0
    %v402 = vadd.f32 %v397, %v401
    %403 = vst [vmem:[#allocation12] sm:$0xff] %v402
    %v404 = vld [vmem:[#allocation2] sm:$0xff]
    %v405 = vld [vmem:[#allocation2 + $0x8] sm:$0xff]
    %v406 = vld [vmem:[#allocation2 + $0x10] sm:$0xff]
    %v407 = vld [vmem:[#allocation2 + $0x18] sm:$0xff]
    %v408 = vld [vmem:[#allocation2 + $0x20] sm:$0xff]
    %v409 = vld [vmem:[#allocation2 + $0x28] sm:$0xff]
    %v410 = vld [vmem:[#allocation2 + $0x30] sm:$0xff]
    %v411 = vld [vmem:[#allocation2 + $0x38] sm:$0xff]
    %v412 = vld [vmem:[#allocation2 + $0x40] sm:$0xff]
    %v413 = vld [vmem:[#allocation2 + $0x48] sm:$0xff]
    %v414 = vld [vmem:[#allocation2 + $0x50] sm:$0xff]
    %v415 = vld [vmem:[#allocation2 + $0x58] sm:$0xff]
    %v416 = vld [vmem:[#allocation2 + $0x60] sm:$0xff]
    %v417 = vld [vmem:[#allocation2 + $0x68] sm:$0xff]
    %v418 = vld [vmem:[#allocation2 + $0x70] sm:$0xff]
    %v419 = vld [vmem:[#allocation2 + $0x78] sm:$0xff]
    %v420 = vld [vmem:[#allocation8] sm:$0xff]
    %v421 = vld [vmem:[#allocation8 + $0x8] sm:$0xff]
    %v422 = vld [vmem:[#allocation8 + $0x10] sm:$0xff]
    %v423 = vld [vmem:[#allocation8 + $0x18] sm:$0xff]
    %v424 = vld [vmem:[#allocation8 + $0x20] sm:$0xff]
    %v425 = vld [vmem:[#allocation8 + $0x28] sm:$0xff]
    %v426 = vld [vmem:[#allocation8 + $0x30] sm:$0xff]
    %v427 = vld [vmem:[#allocation8 + $0x38] sm:$0xff]
    %v428 = vld [vmem:[#allocation8 + $0x40] sm:$0xff]
    %v429 = vld [vmem:[#allocation8 + $0x48] sm:$0xff]
    %v430 = vld [vmem:[#allocation8 + $0x50] sm:$0xff]
    %v431 = vld [vmem:[#allocation8 + $0x58] sm:$0xff]
    %v432 = vld [vmem:[#allocation8 + $0x60] sm:$0xff]
    %v433 = vld [vmem:[#allocation8 + $0x68] sm:$0xff]
    %v434 = vld [vmem:[#allocation8 + $0x70] sm:$0xff]
    %v435 = vld [vmem:[#allocation8 + $0x78] sm:$0xff]
    %436 = vmatprep.subr.mxu0 0.0
    %437 = vmatpush1.msra.mxu0 %v420
    %438 = vmatprep.subr.mxu0 0.0
    %439 = vmatpush1.msra.mxu0 %v421
    %440 = vmatprep.subr.mxu0 0.0
    %441 = vmatpush1.msra.mxu0 %v422
    %442 = vmatprep.subr.mxu0 0.0
    %443 = vmatpush1.msra.mxu0 %v423
    %444 = vmatprep.subr.mxu0 0.0
    %445 = vmatpush1.msra.mxu0 %v424
    %446 = vmatprep.subr.mxu0 0.0
    %447 = vmatpush1.msra.mxu0 %v425
    %448 = vmatprep.subr.mxu0 0.0
    %449 = vmatpush1.msra.mxu0 %v426
    %450 = vmatprep.subr.mxu0 0.0
    %451 = vmatpush1.msra.mxu0 %v427
    %452 = vmatprep.subr.mxu0 0.0
    %453 = vmatpush1.msra.mxu0 %v428
    %454 = vmatprep.subr.mxu0 0.0
    %455 = vmatpush1.msra.mxu0 %v429
    %456 = vmatprep.subr.mxu0 0.0
    %457 = vmatpush1.msra.mxu0 %v430
    %458 = vmatprep.subr.mxu0 0.0
    %459 = vmatpush1.msra.mxu0 %v431
    %460 = vmatprep.subr.mxu0 0.0
    %461 = vmatpush1.msra.mxu0 %v432
    %462 = vmatprep.subr.mxu0 0.0
    %463 = vmatpush1.msra.mxu0 %v433
    %464 = vmatprep.subr.mxu0 0.0
    %465 = vmatpush1.msra.mxu0 %v434
    %466 = vmatprep.subr.mxu0 0.0
    %467 = vmatpush1.msra.mxu0 %v435
    %468 = vmatprep.subr.mxu0 0.0
    %469 = vmatpush1.msra.mxu0 0.0
    %470 = vmatprep.subr.mxu0 0.0
    %471 = vmatpush1.msra.mxu0 0.0
    %472 = vmatprep.subr.mxu0 0.0
    %473 = vmatpush1.msra.mxu0 0.0
    %474 = vmatprep.subr.mxu0 0.0
    %475 = vmatpush1.msra.mxu0 0.0
    %476 = vmatprep.subr.mxu0 0.0
    %477 = vmatpush1.msra.mxu0 0.0
    %478 = vmatprep.subr.mxu0 0.0
    %479 = vmatpush1.msra.mxu0 0.0
    %480 = vmatprep.subr.mxu0 0.0
    %481 = vmatpush1.msra.mxu0 0.0
    %482 = vmatprep.subr.mxu0 0.0
    %483 = vmatpush1.msra.mxu0 0.0
    %484 = vmatprep.subr.mxu0 0.0
    %485 = vmatpush1.msra.mxu0 0.0
    %486 = vmatprep.subr.mxu0 0.0
    %487 = vmatpush1.msra.mxu0 0.0
    %488 = vmatprep.subr.mxu0 0.0
    %489 = vmatpush1.msra.mxu0 0.0
    %490 = vmatprep.subr.mxu0 0.0
    %491 = vmatpush1.msra.mxu0 0.0
    %492 = vmatprep.subr.mxu0 0.0
    %493 = vmatpush1.msra.mxu0 0.0
    %494 = vmatprep.subr.mxu0 0.0
    %495 = vmatpush1.msra.mxu0 0.0
    %496 = vmatprep.subr.mxu0 0.0
    %497 = vmatpush1.msra.mxu0 0.0
    %498 = vmatprep.subr.mxu0 0.0
    %499 = vmatpush1.msra.mxu0 0.0
    %500 = vmatprep.mubr.f32.mxu0 0.0
    %501 = vmatmul.mubr.f32.gmra.mrb[0].mxu0 %v270
    %v502 = vpop.f32.mrb[0].mxu0
    %v503 = vadd.f32 0.0, %v502
    %v504 = vpop.f32.mrb[0].mxu0
    %505 = vmatprep.mubr.f32.mxu0 0.0
    %506 = vmatmul.mubr.f32.gmra.mrb[0].mxu0 %v271
    %v507 = vpop.f32.mrb[0].mxu0
    %v508 = vadd.f32 0.0, %v507
    %v509 = vpop.f32.mrb[0].mxu0
    %510 = vmatprep.mubr.f32.mxu0 0.0
    %511 = vmatmul.mubr.f32.gmra.mrb[0].mxu0 %v272
    %v512 = vpop.f32.mrb[0].mxu0
    %v513 = vadd.f32 0.0, %v512
    %v514 = vpop.f32.mrb[0].mxu0
    %515 = vmatprep.mubr.f32.mxu0 0.0
    %516 = vmatmul.mubr.f32.gmra.mrb[0].mxu0 %v273
    %v517 = vpop.f32.mrb[0].mxu0
    %v518 = vadd.f32 0.0, %v517
    %v519 = vpop.f32.mrb[0].mxu0
    %520 = vmatprep.mubr.f32.mxu0 0.0
    %521 = vmatmul.mubr.f32.gmra.mrb[0].mxu0 %v274
    %v522 = vpop.f32.mrb[0].mxu0
    %v523 = vadd.f32 0.0, %v522
    %v524 = vpop.f32.mrb[0].mxu0
    %525 = vmatprep.mubr.f32.mxu0 0.0
    %526 = vmatmul.mubr.f32.gmra.mrb[0].mxu0 %v275
    %v527 = vpop.f32.mrb[0].mxu0
    %v528 = vadd.f32 0.0, %v527
    %v529 = vpop.f32.mrb[0].mxu0
    %530 = vmatprep.mubr.f32.mxu0 0.0
    %531 = vmatmul.mubr.f32.gmra.mrb[0].mxu0 %v276
    %v532 = vpop.f32.mrb[0].mxu0
    %v533 = vadd.f32 0.0, %v532
    %v534 = vpop.f32.mrb[0].mxu0
    %535 = vmatprep.mubr.f32.mxu0 0.0
    %536 = vmatmul.mubr.f32.gmra.mrb[0].mxu0 %v277
    %v537 = vpop.f32.mrb[0].mxu0
    %v538 = vadd.f32 0.0, %v537
    %v539 = vpop.f32.mrb[0].mxu0
    %540 = vmatprep.mubr.f32.mxu0 0.0
    %541 = vmatmul.mubr.f32.gmra.mrb[0].mxu0 %v278
    %v542 = vpop.f32.mrb[0].mxu0
    %v543 = vadd.f32 0.0, %v542
    %v544 = vpop.f32.mrb[0].mxu0
    %545 = vmatprep.mubr.f32.mxu0 0.0
    %546 = vmatmul.mubr.f32.gmra.mrb[0].mxu0 %v279
    %v547 = vpop.f32.mrb[0].mxu0
    %v548 = vadd.f32 0.0, %v547
    %v549 = vpop.f32.mrb[0].mxu0
    %550 = vmatprep.mubr.f32.mxu0 0.0
    %551 = vmatmul.mubr.f32.gmra.mrb[0].mxu0 %v280
    %v552 = vpop.f32.mrb[0].mxu0
    %v553 = vadd.f32 0.0, %v552
    %v554 = vpop.f32.mrb[0].mxu0
    %555 = vmatprep.mubr.f32.mxu0 0.0
    %556 = vmatmul.mubr.f32.gmra.mrb[0].mxu0 %v281
    %v557 = vpop.f32.mrb[0].mxu0
    %v558 = vadd.f32 0.0, %v557
    %v559 = vpop.f32.mrb[0].mxu0
    %560 = vmatprep.mubr.f32.mxu0 0.0
    %561 = vmatmul.mubr.f32.gmra.mrb[0].mxu0 %v282
    %v562 = vpop.f32.mrb[0].mxu0
    %v563 = vadd.f32 0.0, %v562
    %v564 = vpop.f32.mrb[0].mxu0
    %565 = vmatprep.mubr.f32.mxu0 0.0
    %566 = vmatmul.mubr.f32.gmra.mrb[0].mxu0 %v283
    %v567 = vpop.f32.mrb[0].mxu0
    %v568 = vadd.f32 0.0, %v567
    %v569 = vpop.f32.mrb[0].mxu0
    %570 = vmatprep.mubr.f32.mxu0 0.0
    %571 = vmatmul.mubr.f32.gmra.mrb[0].mxu0 %v284
    %v572 = vpop.f32.mrb[0].mxu0
    %v573 = vadd.f32 0.0, %v572
    %v574 = vpop.f32.mrb[0].mxu0
    %575 = vmatprep.mubr.f32.mxu0 0.0
    %576 = vmatmul.mubr.f32.gmra.mrb[0].mxu0 %v285
    %v577 = vpop.f32.mrb[0].mxu0
    %v578 = vadd.f32 0.0, %v577
    %v579 = vpop.f32.mrb[0].mxu0
    %580 = vdwg.mxu0
    %v581 = vadd.f32 %v404, %v503
    %v582 = vadd.f32 %v405, %v508
    %v583 = vadd.f32 %v406, %v513
    %v584 = vadd.f32 %v407, %v518
    %v585 = vadd.f32 %v408, %v523
    %v586 = vadd.f32 %v409, %v528
    %v587 = vadd.f32 %v410, %v533
    %v588 = vadd.f32 %v411, %v538
    %v589 = vadd.f32 %v412, %v543
    %v590 = vadd.f32 %v413, %v548
    %v591 = vadd.f32 %v414, %v553
    %v592 = vadd.f32 %v415, %v558
    %v593 = vadd.f32 %v416, %v563
    %v594 = vadd.f32 %v417, %v568
    %v595 = vadd.f32 %v418, %v573
    %v596 = vadd.f32 %v419, %v578
    %597 = vst [vmem:[#allocation2] sm:$0xff] %v581
    %598 = vst [vmem:[#allocation2 + $0x8] sm:$0xff] %v582
    %599 = vst [vmem:[#allocation2 + $0x10] sm:$0xff] %v583
    %600 = vst [vmem:[#allocation2 + $0x18] sm:$0xff] %v584
    %601 = vst [vmem:[#allocation2 + $0x20] sm:$0xff] %v585
    %602 = vst [vmem:[#allocation2 + $0x28] sm:$0xff] %v586
    %603 = vst [vmem:[#allocation2 + $0x30] sm:$0xff] %v587
    %604 = vst [vmem:[#allocation2 + $0x38] sm:$0xff] %v588
    %605 = vst [vmem:[#allocation2 + $0x40] sm:$0xff] %v589
    %606 = vst [vmem:[#allocation2 + $0x48] sm:$0xff] %v590
    %607 = vst [vmem:[#allocation2 + $0x50] sm:$0xff] %v591
    %608 = vst [vmem:[#allocation2 + $0x58] sm:$0xff] %v592
    %609 = vst [vmem:[#allocation2 + $0x60] sm:$0xff] %v593
    %610 = vst [vmem:[#allocation2 + $0x68] sm:$0xff] %v594
    %611 = vst [vmem:[#allocation2 + $0x70] sm:$0xff] %v595
    %612 = vst [vmem:[#allocation2 + $0x78] sm:$0xff] %v596
    // Predicated region
    $region38: #{tpu_custom_call.1} parent=1 // pred_check
      %p613 = pneg %p66
    $region39: #{tpu_custom_call.1} parent=1 // pred_check_branch
      %615 = sbr.rel (%p613) target = $region41
    $region40: #{tpu_custom_call.1} parent=1 // pred_region
      %v616 = vld [vmem:[#allocation2] sm:$0xff]
      %v617 = vld [vmem:[#allocation2 + $0x8] sm:$0xff]
      %v618 = vld [vmem:[#allocation2 + $0x10] sm:$0xff]
      %v619 = vld [vmem:[#allocation2 + $0x18] sm:$0xff]
      %v620 = vld [vmem:[#allocation2 + $0x20] sm:$0xff]
      %v621 = vld [vmem:[#allocation2 + $0x28] sm:$0xff]
      %v622 = vld [vmem:[#allocation2 + $0x30] sm:$0xff]
      %v623 = vld [vmem:[#allocation2 + $0x38] sm:$0xff]
      %v624 = vld [vmem:[#allocation2 + $0x40] sm:$0xff]
      %v625 = vld [vmem:[#allocation2 + $0x48] sm:$0xff]
      %v626 = vld [vmem:[#allocation2 + $0x50] sm:$0xff]
      %v627 = vld [vmem:[#allocation2 + $0x58] sm:$0xff]
      %v628 = vld [vmem:[#allocation2 + $0x60] sm:$0xff]
      %v629 = vld [vmem:[#allocation2 + $0x68] sm:$0xff]
      %v630 = vld [vmem:[#allocation2 + $0x70] sm:$0xff]
      %v631 = vld [vmem:[#allocation2 + $0x78] sm:$0xff]
      %v632 = vld [vmem:[%s4] sm:$0x1]
      %v634 = vlaneseq
      %v635 = vshrl.u32 %v634, 7
      %v636 = vsub.s32 0, %v635
      %v637 = vrot.slane %v632, %v636
      %v639 = vadd.f32 %v616, %v637
      %v640 = vadd.f32 %v617, %v637
      %v641 = vadd.f32 %v618, %v637
      %v642 = vadd.f32 %v619, %v637
      %v643 = vadd.f32 %v620, %v637
      %v644 = vadd.f32 %v621, %v637
      %v645 = vadd.f32 %v622, %v637
      %v646 = vadd.f32 %v623, %v637
      %v647 = vadd.f32 %v624, %v637
      %v648 = vadd.f32 %v625, %v637
      %v649 = vadd.f32 %v626, %v637
      %v650 = vadd.f32 %v627, %v637
      %v651 = vadd.f32 %v628, %v637
      %v652 = vadd.f32 %v629, %v637
      %v653 = vadd.f32 %v630, %v637
      %v654 = vadd.f32 %v631, %v637
      %655 = vst [vmem:[#allocation9] sm:$0xff] %v639
      %656 = vst [vmem:[#allocation9 + $0x8] sm:$0xff] %v640
      %657 = vst [vmem:[#allocation9 + $0x10] sm:$0xff] %v641
      %658 = vst [vmem:[#allocation9 + $0x18] sm:$0xff] %v642
      %659 = vst [vmem:[#allocation9 + $0x20] sm:$0xff] %v643
      %660 = vst [vmem:[#allocation9 + $0x28] sm:$0xff] %v644
      %661 = vst [vmem:[#allocation9 + $0x30] sm:$0xff] %v645
      %662 = vst [vmem:[#allocation9 + $0x38] sm:$0xff] %v646
      %663 = vst [vmem:[#allocation9 + $0x40] sm:$0xff] %v647
      %664 = vst [vmem:[#allocation9 + $0x48] sm:$0xff] %v648
      %665 = vst [vmem:[#allocation9 + $0x50] sm:$0xff] %v649
      %666 = vst [vmem:[#allocation9 + $0x58] sm:$0xff] %v650
      %667 = vst [vmem:[#allocation9 + $0x60] sm:$0xff] %v651
      %668 = vst [vmem:[#allocation9 + $0x68] sm:$0xff] %v652
      %669 = vst [vmem:[#allocation9 + $0x70] sm:$0xff] %v653
      %670 = vst [vmem:[#allocation9 + $0x78] sm:$0xff] %v654
    $region41: #{tpu_custom_call.1} parent=1 // pred_fallthru
      _
    // Predicated region
    $region42: #{tpu_custom_call.1} parent=1 // pred_check
      _
    $region43: #{tpu_custom_call.1} parent=1 // pred_check_branch
      %672 = sbr.rel (0) target = $region45
    $region44: #{tpu_custom_call.1} parent=1 // pred_region
      %s674 = ssub.s32 2048, 2048
      %675 = vsyncadd [#allocation5], %s674
      %s676 = sshll.u32 [#allocation9], 4
      %s677 = int_to_ptr.vmem [resolvable:$true] %s676
      %682 = dma.vmem_to_hbm [thread:$0]  %s677, 2048, %s5, [#allocation5], 128, 128, 8
    $region45: #{tpu_custom_call.1} parent=1 // pred_fallthru
      _
    // Predicated region
    $region46: #{tpu_custom_call.1} parent=1 // pred_check
      _
    $region47: #{tpu_custom_call.1} parent=1 // pred_check_branch
      %684 = sbr.rel (0) target = $region49
    $region48: #{tpu_custom_call.1} parent=1 // pred_region
      %s686 = ssub.s32 2048, 2048
      %687 = vsyncadd [#allocation11], %s686
      %s688 = sshll.u32 [#allocation10], 4
      %s689 = int_to_ptr.vmem [resolvable:$true] %s688
      %694 = dma.vmem_to_hbm [thread:$0]  %s689, 2048, %s6, [#allocation11], 128, 128, 8
    $region49: #{tpu_custom_call.1} parent=1 // pred_fallthru
      _
    // Predicated region
    $region50: #{tpu_custom_call.1} parent=1 // pred_check
      _
    $region51: #{tpu_custom_call.1} parent=1 // pred_check_branch
      %696 = sbr.rel (0) target = $region53
    $region52: #{tpu_custom_call.1} parent=1 // pred_region
      %s698 = ssub.s32 128, 128
      %699 = vsyncadd [#allocation11], %s698
      %s701 = sshll.u32 [#allocation12], 4
      %s702 = int_to_ptr.vmem [resolvable:$true] %s701
      %704 = dma.vmem_to_hbm [thread:$0]  %s702, 128, %s7, [#allocation11]
    $region53: #{tpu_custom_call.1} parent=1 // pred_fallthru
      _
    // Predicated region
    $region54: #{tpu_custom_call.1} parent=1 // pred_check
      _
    $region55: #{tpu_custom_call.1} parent=1 // pred_check_branch
      %706 = sbr.rel (0) target = $region57
    $region56: #{tpu_custom_call.1} parent=1 // pred_region
      %707 = dma.done [#allocation5], 2048
    $region57: #{tpu_custom_call.1} parent=1 // pred_fallthru
      _
    // Predicated region
    $region58: #{tpu_custom_call.1} parent=1 // pred_check
      _
    $region59: #{tpu_custom_call.1} parent=1 // pred_check_branch
      %709 = sbr.rel (0) target = $region61
    $region60: #{tpu_custom_call.1} parent=1 // pred_region
      %710 = dma.done [#allocation11], 2048
    $region61: #{tpu_custom_call.1} parent=1 // pred_fallthru
      _
    // Predicated region
    $region62: #{tpu_custom_call.1} parent=1 // pred_check
      _
    $region63: #{tpu_custom_call.1} parent=1 // pred_check_branch
      %712 = sbr.rel (0) target = $region65
    $region64: #{tpu_custom_call.1} parent=1 // pred_region
      %713 = dma.done [#allocation11], 128
    $region65: #{tpu_custom_call.1} parent=1 // pred_fallthru
      _
    %714 = vsyncpa [#allocation4], 1
    %715 = vsyncpa [#allocation7], 1
    %716 = vsyncpa [#allocation5], 1
    %717 = vsyncpa [#allocation11], 1

</llo_original>
